<compile_context>
chip_gen: v5e
topology: v5e:2x2
jax: 0.10.0
libtpu: 0.0.40
codegen_flags: <defaults>
</compile_context>

<pallas_src>
import functools
import math

import numpy as np
import jax
import jax.numpy as jnp
from jax.experimental import pallas as pl
from jax.experimental.pallas import tpu as pltpu

_VMEM_LIMIT = 48 * 1024 * 1024   # leave headroom inside v7x's 64 MiB physical VMEM


def _round_up(x, m):
    return (x + m - 1) // m * m


def _silu(x):
    # Numerically safe SiLU: x * sigmoid(x) with sigmoid via tanh (EUP slot,
    # saturates cleanly -- no exp() overflow).
    return 0.5 * x * (jnp.tanh(0.5 * x) + 1.0)


# --------------------------------------------------------------------------- #
# Pallas kernel 1: tap-accumulating GEMM (conv-as-GEMM without im2col in HBM)
# --------------------------------------------------------------------------- #
def _tapped_gemm_kernel(x_ref, w_ref, b_ref, o_ref, *,
                        tap_offsets, l_out, in_act, out_act):
    """o[0] = act( sum_t  x[0, off_t : off_t + l_out, :] @ w[t]  + b )."""
    def tap(t, off):
        a = x_ref[0, pl.ds(off, l_out), :]
        if in_act == "silu":
            a = _silu(a.astype(jnp.float32)).astype(jnp.bfloat16)
        return jnp.dot(a, w_ref[t], preferred_element_type=jnp.float32)

    acc = tap(0, tap_offsets[0])
    for t in range(1, len(tap_offsets)):
        acc = acc + tap(t, tap_offsets[t])
    acc = acc + b_ref[...]
    if out_act == "silu":
        acc = _silu(acc)
    o_ref[0] = acc


def _tapped_gemm(xf, wt, bias, tap_offsets, l_out, in_act=None, out_act=None):
    """xf: (B, Lp, K) bf16, wt: (T, K, Np) bf16, bias: (1, Np) f32 ->
       (B, l_out, Np) f32.  Grid = (batch, cout-tiles), both 'parallel'."""
    B, Lp, K = xf.shape
    T, _, Np = wt.shape
    tn = min(256, Np)                       # lane-dense (multiple of 128) output tile
    grid = (B, Np // tn)
    kern = functools.partial(_tapped_gemm_kernel, tap_offsets=tuple(tap_offsets),
                             l_out=l_out, in_act=in_act, out_act=out_act)
    flops = 2 * B * l_out * T * K * Np
    bytes_acc = 2 * (B * Lp * K + T * K * Np) + 4 * (B * l_out * Np + Np)
    return pl.pallas_call(
        kern,
        out_shape=jax.ShapeDtypeStruct((B, l_out, Np), jnp.float32),
        grid=grid,
        in_specs=[pl.BlockSpec((1, Lp, K), lambda b, j: (b, 0, 0)),
                  pl.BlockSpec((T, K, tn), lambda b, j: (0, 0, j)),
                  pl.BlockSpec((1, tn), lambda b, j: (0, j))],
        out_specs=pl.BlockSpec((1, l_out, tn), lambda b, j: (b, 0, j)),
        compiler_params=pltpu.CompilerParams(
            dimension_semantics=("parallel", "parallel"),
            vmem_limit_bytes=_VMEM_LIMIT),
        cost_estimate=pl.CostEstimate(flops=int(flops), transcendentals=0,
                                      bytes_accessed=int(bytes_acc)),
    )(xf, wt, bias)


# --------------------------------------------------------------------------- #
# Linear layers (time_embed, ResBlock emb_layers) through the same GEMM kernel
# --------------------------------------------------------------------------- #
@functools.partial(jax.jit, static_argnames=("in_act", "out_act"))
def _linear_impl(x, w, b, *, in_act, out_act):
    M, K = x.shape
    Nc = w.shape[1]
    ncp = _round_up(Nc, 128)
    xf = x.reshape(1, M, K).astype(jnp.bfloat16)
    wt = jnp.pad(w, ((0, 0), (0, ncp - Nc))).reshape(1, K, ncp).astype(jnp.bfloat16)
    bp = jnp.pad(b, (0, ncp - Nc)).reshape(1, ncp).astype(jnp.float32)
    out = _tapped_gemm(xf, wt, bp, (0,), M, in_act=in_act, out_act=out_act)
    return out[0, :, :Nc]


def pallas_linear(x, p, in_act=None, out_act=None):
    return _linear_impl(x, p["w"], p["b"], in_act=in_act, out_act=out_act)


# --------------------------------------------------------------------------- #
# Conv2d (1x1, 3x3/s1, 3x3/s2) through the tapped GEMM kernel
# --------------------------------------------------------------------------- #
def _prep_conv(x, w, k, stride, ncp):
    """Flatten padded NHWC input so every conv tap is a contiguous offset load.
    Returns bf16 flat input (N, Lp, K), bf16 weights (T, K, ncp), tap offsets,
    and output geometry (Ho, Wo, Wp, l_out)."""
    N, H, W, Cin = x.shape
    Cout = w.shape[-1]
    wpad = jnp.pad(w, ((0, 0), (0, 0), (0, 0), (0, ncp - Cout)))
    if k == 1:
        Ho, Wo, Wp = H, W, W
        xf = x.reshape(N, H * W, Cin)
        wt = wpad.reshape(1, Cin, ncp)
        offs = (0,)
    elif stride == 1:                         # 3x3, pad 1, stride 1
        Ho, Wo, Wp = H, W, W + 2
        xp = jnp.pad(x, ((0, 0), (1, 1), (1, 1), (0, 0)))
        xf = xp.reshape(N, (H + 2) * Wp, Cin)
        wt = wpad.reshape(9, Cin, ncp)
        offs = tuple(i * Wp + j for i in range(3) for j in range(3))
    else:                                     # 3x3, pad 1, stride 2 -> space-to-depth
        assert k == 3 and H % 2 == 0 and W % 2 == 0
        Ho, Wo = H // 2, W // 2
        Wp = Wo + 1
        xp = jnp.pad(x, ((0, 0), (1, 1), (1, 1), (0, 0)))
        z = jnp.concatenate(
            [xp[:, p0::2, q0::2, :] for p0 in (0, 1) for q0 in (0, 1)], axis=-1)
        xf = z.reshape(N, (Ho + 1) * Wp, 4 * Cin)
        wz = jnp.zeros((2, 2, 4, Cin, ncp), w.dtype)
        for di in (0, 1):
            for dj in (0, 1):
                for p0 in (0, 1):
                    for q0 in (0, 1):
                        i, j = 2 * di + p0, 2 * dj + q0
                        if i < 3 and j < 3:
                            wz = wz.at[di, dj, p0 * 2 + q0].set(wpad[i, j])
        wt = wz.reshape(4, 4 * Cin, ncp)
        offs = tuple(di * Wp + dj for di in (0, 1) for dj in (0, 1))
    l_out = (Ho - 1) * Wp + Wo                # flat output length (with k-1 junk cols/row)
    return xf.astype(jnp.bfloat16), wt.astype(jnp.bfloat16), offs, (Ho, Wo, Wp, l_out)


@functools.partial(jax.jit, static_argnames=("k", "stride"))
def _conv2d_impl(x, w, b, residual, *, k, stride):
    N = x.shape[0]
    Cout = w.shape[-1]
    ncp = _round_up(Cout, 128)
    xf, wt, offs, (Ho, Wo, Wp, l_out) = _prep_conv(x, w, k, stride, ncp)
    bp = jnp.pad(b, (0, ncp - Cout)).reshape(1, ncp).astype(jnp.float32)
    flat = _tapped_gemm(xf, wt, bp, offs, l_out)
    rows = Ho * Wp
    if l_out < rows:
        flat = jnp.pad(flat, ((0, 0), (0, rows - l_out), (0, 0)))
    # Un-flatten + drop junk columns + drop padded channels; the residual skip
    # rides along in this same fused XLA epilogue (no extra HBM pass).
    out = flat.reshape(N, Ho, Wp, ncp)[:, :, :Wo, :Cout]
    if residual is not None:
        out = out + residual
    return out


def conv2d(x, p, k, stride, residual=None):
    return _conv2d_impl(x, p["w"], p["b"], residual, k=k, stride=stride)


# --------------------------------------------------------------------------- #
# Pallas kernel 2: fused GroupNorm(32) + (optional emb bias) + SiLU, NHWC
# --------------------------------------------------------------------------- #
def _gn_silu_kernel(x_ref, eb_ref, g_ref, b_ref, memb_ref, membt_ref, o_ref, *,
                    inv_count, eps):
    x = x_ref[0] + eb_ref[...]                                   # (HW, C) + (1, C)
    s = jnp.sum(x, axis=0, keepdims=True)                        # (1, C)
    ss = jnp.sum(x * x, axis=0, keepdims=True)
    gs = jnp.dot(s, memb_ref[...], preferred_element_type=jnp.float32)    # (1, G)
    gss = jnp.dot(ss, memb_ref[...], preferred_element_type=jnp.float32)
    mean_g = gs * inv_count
    var_g = jnp.maximum(gss * inv_count - mean_g * mean_g, 0.0)  # single-pass stats
    rstd_g = jax.lax.rsqrt(var_g + eps)
    mean_c = jnp.dot(mean_g, membt_ref[...], preferred_element_type=jnp.float32)
    rstd_c = jnp.dot(rstd_g, membt_ref[...], preferred_element_type=jnp.float32)
    y = (x - mean_c) * rstd_c * g_ref[...] + b_ref[...]
    o_ref[0] = _silu(y)


@jax.jit
def _gn_silu_impl(x, gamma, beta, ebias):
    # TODO(synk): single-pass per-image block; very large H*W*C would need a
    # tiled two-pass (sum/finalize) variant.
    N, H, W, C = x.shape
    G = 32
    cg = C // G
    HW = H * W
    xr = x.reshape(N, HW, C).astype(jnp.float32)
    memb_np = np.zeros((C, G), np.float32)
    memb_np[np.arange(C), np.arange(C) // cg] = 1.0
    memb = jnp.asarray(memb_np)
    membt = jnp.asarray(np.ascontiguousarray(memb_np.T))
    if ebias is None:
        ebias = jnp.zeros((N, C), jnp.float32)
    else:
        ebias = ebias.astype(jnp.float32)
    g2 = gamma.reshape(1, C).astype(jnp.float32)
    b2 = beta.reshape(1, C).astype(jnp.float32)
    kern = functools.partial(_gn_silu_kernel, inv_count=1.0 / (HW * cg), eps=1e-5)
    y = pl.pallas_call(
        kern,
        out_shape=jax.ShapeDtypeStruct((N, HW, C), jnp.float32),
        grid=(N,),
        in_specs=[pl.BlockSpec((1, HW, C), lambda n: (n, 0, 0)),
                  pl.BlockSpec((1, C), lambda n: (n, 0)),
                  pl.BlockSpec((1, C), lambda n: (0, 0)),
                  pl.BlockSpec((1, C), lambda n: (0, 0)),
                  pl.BlockSpec((C, G), lambda n: (0, 0)),
                  pl.BlockSpec((G, C), lambda n: (0, 0))],
        out_specs=pl.BlockSpec((1, HW, C), lambda n: (n, 0, 0)),
        compiler_params=pltpu.CompilerParams(
            dimension_semantics=("parallel",),
            vmem_limit_bytes=_VMEM_LIMIT),
    )(xr, ebias, g2, b2, memb, membt)
    return y.reshape(N, H, W, C)


def groupnorm_silu(x, gn, ebias=None):
    return _gn_silu_impl(x, gn["g"], gn["b"], ebias)


# --------------------------------------------------------------------------- #
# Parameter construction (shapes follow the module's __init__)
# --------------------------------------------------------------------------- #
class KeyGen:
    def __init__(self, seed):
        self._key = jax.random.PRNGKey(seed)

    def __call__(self):
        self._key, k = jax.random.split(self._key)
        return k


def init_conv(kg, cin, cout, k):
    fan_in = k * k * cin
    w = jax.random.normal(kg(), (k, k, cin, cout), jnp.float32) / math.sqrt(fan_in)
    b = 0.01 * jax.random.normal(kg(), (cout,), jnp.float32)
    return {"w": w, "b": b}


def init_linear(kg, din, dout):
    w = jax.random.normal(kg(), (din, dout), jnp.float32) / math.sqrt(din)
    b = 0.01 * jax.random.normal(kg(), (dout,), jnp.float32)
    return {"w": w, "b": b}


def init_gn(c):
    return {"g": jnp.ones((c,), jnp.float32), "b": jnp.zeros((c,), jnp.float32)}


def lyr_conv3(kg, cin, cout):
    return {"type": "conv3", **init_conv(kg, cin, cout, 3)}


def lyr_down(kg, cin, cout):
    # Downsample(use_conv=True): conv 3x3, stride 2, pad 1
    return {"type": "down", **init_conv(kg, cin, cout, 3)}


def lyr_conv1(kg, cin, cout):
    # TODO(synk): zero_module() convs are zero-init in PyTorch; random here so
    # the kernels are actually exercised.
    return {"type": "conv1", **init_conv(kg, cin, cout, 1)}


def lyr_res(kg, cin, cout, emb_dim):
    return {
        "type": "res", "cin": cin, "cout": cout,
        "in_gn": init_gn(cin), "in_conv": init_conv(kg, cin, cout, 3),
        "emb": init_linear(kg, emb_dim, cout),
        "out_gn": init_gn(cout), "out_conv": init_conv(kg, cout, cout, 3),
        "skip": None if cin == cout else init_conv(kg, cin, cout, 1),
    }


def build_params(seed, model_channels, hint_channels, context_dim,
                 channel_mult, num_res_blocks):
    kg = KeyGen(seed)
    ted = model_channels * 4
    hb = 32  # hint_base_channels
    if isinstance(num_res_blocks, int):
        nrb = [num_res_blocks] * len(channel_mult)
    else:
        nrb = list(num_res_blocks)

    p = {}
    p["time1"] = init_linear(kg, model_channels, ted)
    p["time2"] = init_linear(kg, ted, ted)

    p["vis"] = [
        lyr_conv3(kg, 3, hb),
        lyr_res(kg, hb, hb, ted),
        lyr_down(kg, hb, hb),
        lyr_res(kg, hb, hb * 2, ted),
        lyr_down(kg, hb * 2, hb * 2),
        lyr_res(kg, hb * 2, hb * 4, ted),
        lyr_down(kg, hb * 4, hb * 4),
        lyr_res(kg, hb * 4, hb * 8, ted),
        lyr_down(kg, hb * 8, hb * 8),
        lyr_conv3(kg, hb * 8, context_dim),
    ]
    p["hint"] = [
        lyr_conv3(kg, hint_channels, hb),
        lyr_res(kg, hb, hb, ted),
        lyr_down(kg, hb, hb),
        lyr_res(kg, hb, hb * 3, ted),
        lyr_down(kg, hb * 3, hb * 3),
        lyr_res(kg, hb * 3, hb * 8, ted),
        lyr_down(kg, hb * 8, hb * 8),
    ]

    input_blocks = [[lyr_conv3(kg, hb * 8, model_channels)]]
    zero_convs = [lyr_conv1(kg, model_channels, model_channels)]
    ch = model_channels
    for level, mult in enumerate(channel_mult):
        for _ in range(nrb[level]):
            input_blocks.append([lyr_res(kg, ch, mult * model_channels, ted)])
            ch = mult * model_channels
            zero_convs.append(lyr_conv1(kg, ch, ch))
        if level != len(channel_mult) - 1:
            input_blocks.append([lyr_down(kg, ch, ch)])
            zero_convs.append(lyr_conv1(kg, ch, ch))
    p["input_blocks"] = input_blocks
    p["zero_convs"] = zero_convs
    p["middle"] = [lyr_res(kg, ch, ch, ted)]
    p["middle_out"] = lyr_conv1(kg, ch, ch)
    return p


# --------------------------------------------------------------------------- #
# Module application
# --------------------------------------------------------------------------- #
def apply_resblock(p, x, emb):
    h = groupnorm_silu(x, p["in_gn"])
    h = conv2d(h, p["in_conv"], 3, 1)
    # emb_layers = Sequential(SiLU(), Linear(emb_dim, out_ch)); the per-channel
    # bias is fused into the following GroupNorm kernel (no broadcast + add).
    eo = pallas_linear(emb, p["emb"], in_act="silu")
    h = groupnorm_silu(h, p["out_gn"], ebias=eo)
    # TODO(synk): Dropout(p=0) is identity, omitted.
    skip = x if p["skip"] is None else conv2d(x, p["skip"], 1, 1)
    h = conv2d(h, p["out_conv"], 3, 1, residual=skip)   # residual fused in epilogue
    return h


def apply_sequential(layers, h, emb):
    for lyr in layers:
        t = lyr["type"]
        if t == "conv3":
            h = conv2d(h, lyr, 3, 1)
        elif t == "down":
            h = conv2d(h, lyr, 3, 2)
        elif t == "conv1":
            h = conv2d(h, lyr, 1, 1)
        elif t == "res":
            h = apply_resblock(lyr, h, emb)
        else:
            raise ValueError(t)
    return h


def timestep_embedding(timesteps, dim, max_period=10000):
    half = dim // 2
    freqs = jnp.exp(-math.log(max_period) *
                    jnp.arange(half, dtype=jnp.float32) / half)
    args = timesteps.astype(jnp.float32)[:, None] * freqs[None]
    return jnp.concatenate([jnp.cos(args), jnp.sin(args)], axis=-1)


def to_nchw(x_nhwc):
    return jnp.transpose(x_nhwc, (0, 3, 1, 2))


def controlnet_forward(params, x, p_concat, timesteps, cond_tex, model_channels):
    """Mirrors ControlNet.forward; inputs in PyTorch NCHW convention."""
    del x  # `x` is unused in the original forward as well
    N = p_concat.shape[0]

    # time embedding
    t_emb = timestep_embedding(timesteps, model_channels)
    e1 = pallas_linear(t_emb, params["time1"], out_act="silu")
    emb = pallas_linear(e1, params["time2"])

    p_nhwc = jnp.transpose(p_concat, (0, 2, 3, 1))
    pwarped_pixels = p_nhwc[..., 3:6]
    pwarped_mask = p_concat[:, 6:7]                       # (N,1,H,W) NCHW

    # input_vis_block(...).permute(0,2,3,1) -> already NHWC here
    pwarped_feats = apply_sequential(params["vis"], pwarped_pixels, emb)
    hf, wf = pwarped_feats.shape[1], pwarped_feats.shape[2]

    # F.interpolate(mode='nearest') to (hf, wf)
    Hm, Wm = pwarped_mask.shape[2], pwarped_mask.shape[3]
    idx_h = (jnp.arange(hf) * Hm) // hf
    idx_w = (jnp.arange(wf) * Wm) // wf
    mask_ds = pwarped_mask[:, :, idx_h, :][:, :, :, idx_w]  # (N,1,hf,wf)

    # device-side ordered masked gather into a static (hf*wf)-long buffer
    P = hf * wf
    C = pwarped_feats.shape[-1]
    m = mask_ds.reshape(N, P)
    feats_flat = pwarped_feats.reshape(N, P, C)
    sel = m > 0
    pos = jnp.cumsum(sel.astype(jnp.int32), axis=1) - 1
    pos = jnp.where(sel, pos, P)                         # unselected -> dropped row
    toks_full = jnp.zeros((N, P + 1, C), jnp.float32)
    toks_full = toks_full.at[jnp.arange(N)[:, None], pos].set(feats_flat)
    toks_full = toks_full[:, :P]
    counts = sel.sum(axis=1)

    # hint trunk + zero convs + middle -- dispatched BEFORE the max_len sync
    h = apply_sequential(params["hint"], p_nhwc, emb)
    outs = []
    for blk, zc in zip(params["input_blocks"], params["zero_convs"]):
        h = apply_sequential(blk, h, emb)
        outs.append(to_nchw(conv2d(h, zc, 1, 1)))
    h = apply_sequential(params["middle"], h, emb)
    outs.append(to_nchw(conv2d(h, params["middle_out"], 1, 1)))

    # dynamic max_len: single host scalar sync, after all heavy work dispatched
    max_len = int(jax.device_get(jnp.max(counts)))
    pwarped_tokens = toks_full[:, :max_len]
    cond_tex = jnp.concatenate([cond_tex, pwarped_tokens], axis=1)

    outs.append(mask_ds)
    outs.append(cond_tex)
    return outs


# --------------------------------------------------------------------------- #
# Main
# --------------------------------------------------------------------------- #
if __name__ == "__main__":
    # small synthetic config
    N = 2
    H = W = 32
    model_channels = 32
    hint_channels = 7          # p_concat: [..3 aux.., 3 warped pixels, 1 mask]
    context_dim = 256
    channel_mult = (1, 2)
    num_res_blocks = 1
    seq_len = 8

    params = build_params(0, model_channels, hint_channels, context_dim,
                          channel_mult, num_res_blocks)

    key = jax.random.PRNGKey(0)
    k1, k2, k3, k4, k5 = jax.random.split(key, 5)
    x = jax.random.normal(k1, (N, 4, 4, 4), jnp.float32)          # unused by forward
    p_rest = jax.random.normal(k2, (N, 6, H, W), jnp.float32)
    mask = (jax.random.uniform(k3, (N, 1, H, W)) > 0.5).astype(jnp.float32)
    mask = mask.at[:, :, 0, 0].set(1.0)                            # ensure max_len >= 1
    p_concat = jnp.concatenate([p_rest, mask], axis=1)             # (N, 7, H, W)
    timesteps = jnp.array([3.0, 977.0], jnp.float32)
    cond_tex = 0.1 * jax.random.normal(k4, (N, seq_len, context_dim), jnp.float32)

    outs = controlnet_forward(params, x, p_concat, timesteps, cond_tex,
                              model_channels)
    for o in outs:
        jax.block_until_ready(o)

    # basic sanity on output structure
    assert len(outs) == len(params["input_blocks"]) + 3
    assert outs[-1].shape[0] == N and outs[-1].shape[-1] == context_dim
    assert not any(bool(jnp.isnan(o).any()) for o in outs)
    print("KERNEL_OK")
</pallas_src>

<mosaic_0001>
module attributes {stable_mosaic.version = 11 : i64} {
  func.func @_tapped_gemm_kernel(%arg0: i32, %arg1: i32, %arg2: memref<1x2x32xbf16, #tpu.memory_space<vmem>>, %arg3: memref<1x32x128xbf16, #tpu.memory_space<vmem>>, %arg4: memref<1x128xf32, #tpu.memory_space<vmem>>, %arg5: memref<1x2x128xf32, #tpu.memory_space<vmem>>) attributes {dimension_semantics = [#tpu.dimension_semantics<parallel>, #tpu.dimension_semantics<parallel>], iteration_bounds = array<i64: 1, 1>, scalar_prefetch = 0 : i64, scratch_operands = 0 : i64, tpu.core_type = #tpu.core_type<tc>, window_params = [{transform_indices = @transform_0, window_bounds = array<i64: 1, 2, 32>}, {transform_indices = @transform_1, window_bounds = array<i64: 1, 32, 128>}, {transform_indices = @transform_2, window_bounds = array<i64: 1, 128>}, {transform_indices = @transform_3, window_bounds = array<i64: 1, 2, 128>}]} {
    %c0 = arith.constant 0 : index
    %c0_0 = arith.constant 0 : index
    %c0_1 = arith.constant 0 : index
    %0 = vector.load %arg2[%c0, %c0_0, %c0_1] : memref<1x2x32xbf16, #tpu.memory_space<vmem>>, vector<1x2x32xbf16>
    %1 = vector.shape_cast %0 : vector<1x2x32xbf16> to vector<2x32xbf16>
    %c0_2 = arith.constant 0 : index
    %c0_3 = arith.constant 0 : index
    %c0_4 = arith.constant 0 : index
    %2 = vector.load %arg3[%c0_2, %c0_3, %c0_4] : memref<1x32x128xbf16, #tpu.memory_space<vmem>>, vector<1x32x128xbf16>
    %3 = vector.shape_cast %2 : vector<1x32x128xbf16> to vector<32x128xbf16>
    %cst = arith.constant dense<0.000000e+00> : vector<2x128xf32>
    %4 = tpu.matmul %1, %3, %cst {dimension_numbers = #tpu.dot_dimension_numbers<[1], [0], [0], [1], [0, 0, 1, 1], [], []>} : vector<2x32xbf16>, vector<32x128xbf16>, vector<2x128xf32> -> vector<2x128xf32>
    %c0_5 = arith.constant 0 : index
    %c0_6 = arith.constant 0 : index
    %5 = vector.load %arg4[%c0_5, %c0_6] : memref<1x128xf32, #tpu.memory_space<vmem>>, vector<1x128xf32>
    %6 = vector.broadcast %5 : vector<1x128xf32> to vector<2x128xf32>
    %7 = arith.addf %4, %6 : vector<2x128xf32>
    %cst_7 = arith.constant 5.000000e-01 : f32
    %8 = vector.broadcast %cst_7 : f32 to vector<2x128xf32>
    %9 = arith.mulf %8, %7 : vector<2x128xf32>
    %cst_8 = arith.constant 5.000000e-01 : f32
    %10 = vector.broadcast %cst_8 : f32 to vector<2x128xf32>
    %11 = arith.mulf %10, %7 : vector<2x128xf32>
    %12 = math.tanh %11 : vector<2x128xf32>
    %cst_9 = arith.constant 1.000000e+00 : f32
    %13 = vector.broadcast %cst_9 : f32 to vector<2x128xf32>
    %14 = arith.addf %12, %13 : vector<2x128xf32>
    %15 = arith.mulf %9, %14 : vector<2x128xf32>
    %c0_10 = arith.constant 0 : index
    %c0_11 = arith.constant 0 : index
    %c0_12 = arith.constant 0 : index
    %16 = vector.load %arg5[%c0_10, %c0_11, %c0_12] : memref<1x2x128xf32, #tpu.memory_space<vmem>>, vector<1x2x128xf32>
    %17 = vector.shape_cast %16 : vector<1x2x128xf32> to vector<2x128xf32>
    %18 = vector.shape_cast %15 : vector<2x128xf32> to vector<1x2x128xf32>
    tpu.vector_store %arg5[%c0_10, %c0_11, %c0_12], %18 {strides = array<i32>} : memref<1x2x128xf32, #tpu.memory_space<vmem>>, vector<1x2x128xf32>,
    return
  }
  func.func @transform_0(%arg0: i32, %arg1: i32) -> (i32, i32, i32) {
    %c0_i32 = arith.constant 0 : i32
    %c0_i32_0 = arith.constant 0 : i32
    %c0_i32_1 = arith.constant 0 : i32
    return %arg0, %c0_i32, %c0_i32_0 : i32, i32, i32
  }
  func.func @transform_1(%arg0: i32, %arg1: i32) -> (i32, i32, i32) {
    %c0_i32 = arith.constant 0 : i32
    %c0_i32_0 = arith.constant 0 : i32
    %c0_i32_1 = arith.constant 0 : i32
    return %c0_i32, %c0_i32_0, %arg1 : i32, i32, i32
  }
  func.func @transform_2(%arg0: i32, %arg1: i32) -> (i32, i32) {
    %c0_i32 = arith.constant 0 : i32
    %c0_i32_0 = arith.constant 0 : i32
    return %c0_i32, %arg1 : i32, i32
  }
  func.func @transform_3(%arg0: i32, %arg1: i32) -> (i32, i32, i32) {
    %c0_i32 = arith.constant 0 : i32
    %c0_i32_0 = arith.constant 0 : i32
    return %arg0, %c0_i32, %arg1 : i32, i32, i32
  }
}

</mosaic_0001>

<llo_original>
// kernel: _linear_impl.1
$region0: #{_linear_impl.1}
  #allocation0 [shape = 'u32[]', space=smem, size = 0x4, offset = 0x4, fixed_abs, tag = 'smem constant byte address 0x4 - core index']
  #allocation1 [shape = 'u32[72,128]{1,0:T(1,128)}', space=vmem, size = 0x9000, scoped, tag = 'internal scratch']
  %s0 = inlined_call_operand.vmem [shape: bf16[1,2,32], index: 0, kind: input, shape index: {}]
  %s1 = inlined_call_operand.vmem [shape: bf16[1,32,128], index: 1, kind: input, shape index: {}]
  %s2 = inlined_call_operand.vmem [shape: f32[1,128], index: 2, kind: input, shape index: {}]
  %s3 = inlined_call_operand.hbm [shape: f32[1,2,128], index: 3, kind: output, shape index: {}]
  %s4 = sld [smem:[#allocation0]]
  $region22: #{_linear_impl.1} parent=0
    _
  %s6 = ssub.s32 1, %s4
  %s7 = scalar_select 0, %s6, %s4
  $region1: #{_linear_impl.1} parent=0
    #allocation2 [shape = 'u8[1024]{0}', space=vmem, size = 0x400, scoped, tag = 'output window, operand 0, single buffered']
    #allocation3 [shape = 's32[1]{0}', space=sflag, size = 0x4, scoped, tag = 'scoped memory for _linear_impl.1']
    %8 = vsyncpa [#allocation3], 0
    // Predicated region
    $region2: #{_linear_impl.1} parent=1 // pred_check
      _
    $region3: #{_linear_impl.1} parent=1 // pred_check_branch
      %10 = sbr.rel (0) target = $region5
    $region4: #{_linear_impl.1} parent=1 // pred_region
      _
    $region5: #{_linear_impl.1} parent=1 // pred_fallthru
      _
    // Predicated region
    $region6: #{_linear_impl.1} parent=1 // pred_check
      _
    $region7: #{_linear_impl.1} parent=1 // pred_check_branch
      %12 = sbr.rel (0) target = $region9
    $region8: #{_linear_impl.1} parent=1 // pred_region
      _
    $region9: #{_linear_impl.1} parent=1 // pred_fallthru
      _
    // Predicated region
    $region10: #{_linear_impl.1} parent=1 // pred_check
      _
    $region11: #{_linear_impl.1} parent=1 // pred_check_branch
      %14 = sbr.rel (0) target = $region13
    $region12: #{_linear_impl.1} parent=1 // pred_region
      _
    $region13: #{_linear_impl.1} parent=1 // pred_fallthru
      _
    %v16 = vld [vmem:[%s0] sm:$0x1]
    %v17 = vld [vmem:[%s1] sm:$0xf]
    %v18 = vld [vmem:[%s1 + $0x4] sm:$0xf]
    %v19 = vld [vmem:[%s1 + $0x8] sm:$0xf]
    %v20 = vld [vmem:[%s1 + $0xc] sm:$0xf]
    %v21 = vld [vmem:[%s2] sm:$0x1]
    %v23 = vperm.slane %v21, 0
    %v29 = vunpack.c.l.b16 %v17
    %v30 = vunpack.c.l.b16 %v18
    %v31 = vunpack.c.l.b16 %v19
    %v32 = vunpack.c.l.b16 %v20
    %v33 = vpack.c.b16 %v30, %v29
    %v34 = vpack.c.b16 %v32, %v31
    %vm37 = vcmask 261120
    %v39 = vsel %vm37, %v16, 0
    %41 = vmatpush.bf16.msra.mxu0 0
    %42 = vmatpush.bf16.msra.mxu0 0
    %43 = vmatpush.bf16.msra.mxu0 0
    %44 = vmatpush.bf16.msra.mxu0 0
    %45 = vmatpush.bf16.msra.mxu0 0
    %46 = vmatpush.bf16.msra.mxu0 0
    %47 = vmatpush.bf16.msra.mxu0 %v34
    %48 = vmatpush.bf16.msra.mxu0 %v33
    %49 = vmatmul.bf16.gmra.mxu0 %v39
    %v50 = vpop.f32.mrf.mxu0
    %v51 = vadd.f32 %v23, %v50
    %v52 = vpop.f32.mrf.mxu0
    %53 = vdwg.mxu0
    %v54 = vmul.f32 %v51, 0.5
    %v55 = vtanh.pop %v54
    %v56 = vadd.f32 %v55, 1.0
    %v57 = vmul.f32 %v54, %v56
    %58 = vst [vmem:[#allocation2] sm:$0x3] %v57
    // Predicated region
    $region14: #{_linear_impl.1} parent=1 // pred_check
      _
    $region15: #{_linear_impl.1} parent=1 // pred_check_branch
      %60 = sbr.rel (0) target = $region17
    $region16: #{_linear_impl.1} parent=1 // pred_region
      %62 = vsyncadd [#allocation3], 0
      %s64 = sshll.u32 [#allocation2], 4
      %s65 = int_to_ptr.vmem [resolvable:$true] %s64
      %s66 = sshll.u32 %s3, 4
      %s67 = int_to_ptr.hbm [resolvable:$true] %s66
      %69 = dma.vmem_to_hbm [thread:$0]  %s65, 32, %s67, [#allocation3]
    $region17: #{_linear_impl.1} parent=1 // pred_fallthru
      _
    // Predicated region
    $region18: #{_linear_impl.1} parent=1 // pred_check
      _
    $region19: #{_linear_impl.1} parent=1 // pred_check_branch
      %71 = sbr.rel (0) target = $region21
    $region20: #{_linear_impl.1} parent=1 // pred_region
      %73 = dma.done [#allocation3], 32
    $region21: #{_linear_impl.1} parent=1 // pred_fallthru
      _
    %74 = vsyncpa [#allocation3], 1

</llo_original>
